<compile_context>
chip_gen: v6e
topology: v6e:2x2x1
jax: 0.10.0
libtpu: 0.0.40
codegen_flags: <defaults>
</compile_context>

<pallas_src>
import jax
import jax.numpy as jnp
from jax.experimental import pallas as pl
from jax.experimental.pallas import tpu as pltpu


def cppn_block_kernel(x_ref, wt_ref, b_ref, o_ref):
    # x_ref:  [TM, Kf]  activation tile, storage dtype (f32/bf16), pipelined
    # wt_ref: [Kf, Nf]  block-diagonal transposed weight, storage dtype, resident
    # b_ref:  [1,  Nf]  f32 bias, resident
    # o_ref:  [TM, Nf]  lane-dense output tile
    acc = jnp.dot(x_ref[...], wt_ref[...],
                  preferred_element_type=jnp.float32)   # MXU, f32 accumulate
    acc = acc + b_ref[...]                              # VPU add in f32 (v5e-safe)
    o_ref[...] = jnp.tanh(acc).astype(o_ref.dtype)      # EUP tanh, cast on store


def _pad_cout(c_out):
    """Lane-friendly output width: a power-of-two divisor of 128 if C_out < 128,
    otherwise the next multiple of 128."""
    if c_out >= 128:
        return ((c_out + 127) // 128) * 128
    p = 1
    while p < c_out:
        p *= 2
    return p


def prepare_cppn_block_params(weight, bias, x_dtype):
    """One-time parameter prep: transpose, zero-pad C_out to a lane-friendly
    width, expand to the block-diagonal lane-dense form, and cast the weight
    to the MXU input dtype.  Returns (w_f, b_f, fold, c_out_pad)."""
    c_out, c_in = weight.shape
    c_out_pad = _pad_cout(c_out)
    fold = 128 // c_out_pad if c_out_pad < 128 else 1

    wt = weight.T.astype(x_dtype)                        # [C_in, C_out]
    b = bias.astype(jnp.float32)
    if c_out_pad != c_out:
        wt = jnp.pad(wt, ((0, 0), (0, c_out_pad - c_out)))
        b = jnp.pad(b, (0, c_out_pad - c_out))

    if fold == 1:
        return wt, b.reshape(1, c_out_pad), fold, c_out_pad

    eye = jnp.eye(fold, dtype=wt.dtype)
    w_blk = jnp.einsum("fg,io->figo", eye, wt)           # [fold, C_in, fold, C_out_pad]
    w_blk = w_blk.reshape(fold * c_in, fold * c_out_pad) # block-diagonal
    b_blk = jnp.tile(b, fold).reshape(1, fold * c_out_pad)
    return w_blk, b_blk, fold, c_out_pad


def cppn_block(x, weight, bias, *, tile_rows=8192):
    """Pallas CPPN_block.forward: tanh(x @ W.T + b).

    x:      [N, C_in]          (f32 or bf16; bf16 halves HBM traffic)
    weight: [C_out, C_in]      (PyTorch nn.Linear layout)
    bias:   [C_out]
    tile_rows: row tile of the *folded* problem (each folded row is 128+
               lanes wide).  8192 folded f32 rows ~= 4 MiB per in/out tile.
    returns [N, C_out], same dtype as x.
    """
    N, C_in = x.shape
    C_out = weight.shape[0]

    w_f, b_f, fold, c_out_pad = prepare_cppn_block_params(weight, bias, x.dtype)

    # Pad N so rows fold cleanly and the folded row count is a multiple of 8
    # (keeps the (8,128) block constraint satisfied with no masked loads for
    # small inputs; only a ragged last grid block can still mask).
    row_quantum = fold * 8
    N_pad = ((N + row_quantum - 1) // row_quantum) * row_quantum
    if N_pad != N:
        x = jnp.pad(x, ((0, N_pad - N), (0, 0)))

    M = N_pad // fold                     # folded row count (multiple of 8)
    Kf = fold * C_in
    Nf = fold * c_out_pad                 # multiple of 128 -> unmasked stores

    x_f = x.reshape(M, Kf)                # contiguous row-major -> free reshape

    tm = min(tile_rows, M)
    tm = max(8, (tm // 8) * 8)
    grid = (pl.cdiv(M, tm),)

    itemsize = jnp.dtype(x.dtype).itemsize
    cost = pl.CostEstimate(
        flops=2 * M * Kf * Nf,            # advisory; counts the zero-block FLOPs
        transcendentals=M * Nf,
        bytes_accessed=(M * Kf + M * Nf) * itemsize
        + w_f.size * w_f.dtype.itemsize
        + b_f.size * b_f.dtype.itemsize,
    )

    out_f = pl.pallas_call(
        cppn_block_kernel,
        out_shape=jax.ShapeDtypeStruct((M, Nf), x.dtype),
        grid_spec=pltpu.PrefetchScalarGridSpec(
            num_scalar_prefetch=0,
            grid=grid,
            in_specs=[
                pl.BlockSpec((tm, Kf), lambda i: (i, 0)),   # x tile, pipelined
                pl.BlockSpec((Kf, Nf), lambda i: (0, 0)),   # weight, resident
                pl.BlockSpec((1, Nf), lambda i: (0, 0)),    # bias, resident
            ],
            out_specs=pl.BlockSpec((tm, Nf), lambda i: (i, 0)),
        ),
        compiler_params=pltpu.CompilerParams(
            dimension_semantics=("parallel",),
            # Big row tiles need more than the 16/32 MiB scoped defaults;
            # 48 MiB keeps headroom under v7x's 64 MiB physical VMEM.
            vmem_limit_bytes=48 * 1024 * 1024,
        ),
        cost_estimate=cost,
    )(x_f, w_f, b_f)

    out = out_f.reshape(N_pad, c_out_pad)
    if N_pad != N or c_out_pad != C_out:
        out = out[:N, :C_out]
    return out


if __name__ == "__main__":
    key = jax.random.PRNGKey(0)
    k_x, k_w, k_b = jax.random.split(key, 3)

    # Small shapes consistent with the module: Linear(32 -> 32) on 8 rows.
    N, C_in, C_out = 8, 32, 32
    x = jax.random.normal(k_x, (N, C_in), dtype=jnp.float32)
    bound = 1.0 / jnp.sqrt(jnp.float32(C_in))
    weight = jax.random.uniform(k_w, (C_out, C_in), jnp.float32, -bound, bound)
    bias = jax.random.uniform(k_b, (C_out,), jnp.float32, -bound, bound)

    out = jax.block_until_ready(cppn_block(x, weight, bias))
    ref = jnp.tanh(x @ weight.T + bias)
    assert jnp.allclose(out, ref, atol=1e-5, rtol=1e-5), "mismatch (folded path)"

    # Multi-step tiled grid + padded-N path (N=1000 -> N_pad=1024, tm=64 -> 4 steps).
    N2 = 1000
    x2 = jax.random.normal(k_x, (N2, C_in), dtype=jnp.float32)
    out2 = jax.block_until_ready(cppn_block(x2, weight, bias, tile_rows=64))
    ref2 = jnp.tanh(x2 @ weight.T + bias)
    assert jnp.allclose(out2, ref2, atol=1e-5, rtol=1e-5), "mismatch (tiled/padded-N path)"

    # C_out that does not divide 128 -> zero-padded lane-dense path (40 -> 64, fold=2).
    C_out3 = 40
    w3 = jax.random.uniform(k_w, (C_out3, C_in), jnp.float32, -bound, bound)
    b3 = jax.random.uniform(k_b, (C_out3,), jnp.float32, -bound, bound)
    out3 = jax.block_until_ready(cppn_block(x, w3, b3))
    ref3 = jnp.tanh(x @ w3.T + b3)
    assert jnp.allclose(out3, ref3, atol=1e-5, rtol=1e-5), "mismatch (padded-C_out path)"

    # Wide C_out (>128) -> padded to next multiple of 128, fold=1.
    C_out4, N4 = 160, 64
    w4 = jax.random.uniform(k_w, (C_out4, C_in), jnp.float32, -bound, bound)
    b4 = jax.random.uniform(k_b, (C_out4,), jnp.float32, -bound, bound)
    x4 = jax.random.normal(k_x, (N4, C_in), dtype=jnp.float32)
    out4 = jax.block_until_ready(cppn_block(x4, w4, b4))
    ref4 = jnp.tanh(x4 @ w4.T + b4)
    assert jnp.allclose(out4, ref4, atol=1e-5, rtol=1e-5), "mismatch (wide C_out path)"

    # bf16 activation stream (native bf16 MXU path, f32 accumulate).
    x5 = x.astype(jnp.bfloat16)
    out5 = jax.block_until_ready(cppn_block(x5, weight, bias))
    ref5 = jnp.tanh(x5.astype(jnp.float32) @ weight.T + bias)
    assert jnp.allclose(out5.astype(jnp.float32), ref5, atol=3e-2, rtol=3e-2), \
        "mismatch (bf16 path)"

    print("KERNEL_OK")
</pallas_src>

<mosaic_0001>
module attributes {stable_mosaic.version = 11 : i64} {
  func.func @cppn_block_kernel(%arg0: i32, %arg1: memref<8x128xf32, #tpu.memory_space<vmem>>, %arg2: memref<128x128xf32, #tpu.memory_space<vmem>>, %arg3: memref<1x128xf32, #tpu.memory_space<vmem>>, %arg4: memref<8x128xf32, #tpu.memory_space<vmem>>) attributes {dimension_semantics = [#tpu.dimension_semantics<parallel>], iteration_bounds = array<i64: 1>, scalar_prefetch = 0 : i64, scratch_operands = 0 : i64, tpu.core_type = #tpu.core_type<tc>, window_params = [{transform_indices = @transform_0, window_bounds = array<i64: 8, 128>}, {pipeline_mode = #tpu.pipeline_mode<synchronous>, transform_indices = @transform_1, window_bounds = array<i64: 128, 128>}, {pipeline_mode = #tpu.pipeline_mode<synchronous>, transform_indices = @transform_2, window_bounds = array<i64: 1, 128>}, {transform_indices = @transform_3, window_bounds = array<i64: 8, 128>}]} {
    %c0 = arith.constant 0 : index
    %c0_0 = arith.constant 0 : index
    %0 = vector.load %arg1[%c0, %c0_0] : memref<8x128xf32, #tpu.memory_space<vmem>>, vector<8x128xf32>
    %c0_1 = arith.constant 0 : index
    %c0_2 = arith.constant 0 : index
    %1 = vector.load %arg2[%c0_1, %c0_2] : memref<128x128xf32, #tpu.memory_space<vmem>>, vector<128x128xf32>
    %cst = arith.constant dense<0.000000e+00> : vector<8x128xf32>
    %2 = tpu.matmul %0, %1, %cst {dimension_numbers = #tpu.dot_dimension_numbers<[1], [0], [0], [1], [0, 0, 1, 1], [], []>} : vector<8x128xf32>, vector<128x128xf32>, vector<8x128xf32> -> vector<8x128xf32>
    %c0_3 = arith.constant 0 : index
    %c0_4 = arith.constant 0 : index
    %3 = vector.load %arg3[%c0_3, %c0_4] : memref<1x128xf32, #tpu.memory_space<vmem>>, vector<1x128xf32>
    %4 = vector.broadcast %3 : vector<1x128xf32> to vector<8x128xf32>
    %5 = arith.addf %2, %4 : vector<8x128xf32>
    %6 = math.tanh %5 : vector<8x128xf32>
    %c0_5 = arith.constant 0 : index
    %c0_6 = arith.constant 0 : index
    %7 = vector.load %arg4[%c0_5, %c0_6] : memref<8x128xf32, #tpu.memory_space<vmem>>, vector<8x128xf32>
    tpu.vector_store %arg4[%c0_5, %c0_6], %6 {strides = array<i32>} : memref<8x128xf32, #tpu.memory_space<vmem>>, vector<8x128xf32>,
    return
  }
  func.func @transform_0(%arg0: i32) -> (i32, i32) {
    %c0_i32 = arith.constant 0 : i32
    %c0_i32_0 = arith.constant 0 : i32
    return %arg0, %c0_i32 : i32, i32
  }
  func.func @transform_1(%arg0: i32) -> (i32, i32) {
    %c0_i32 = arith.constant 0 : i32
    %c0_i32_0 = arith.constant 0 : i32
    %c0_i32_1 = arith.constant 0 : i32
    return %c0_i32, %c0_i32_0 : i32, i32
  }
  func.func @transform_2(%arg0: i32) -> (i32, i32) {
    %c0_i32 = arith.constant 0 : i32
    %c0_i32_0 = arith.constant 0 : i32
    %c0_i32_1 = arith.constant 0 : i32
    return %c0_i32, %c0_i32_0 : i32, i32
  }
  func.func @transform_3(%arg0: i32) -> (i32, i32) {
    %c0_i32 = arith.constant 0 : i32
    %c0_i32_0 = arith.constant 0 : i32
    return %arg0, %c0_i32 : i32, i32
  }
}

</mosaic_0001>

<llo_original>
// kernel: tpu_custom_call.1
$region0: #{tpu_custom_call.1}
  #allocation0 [shape = 'u32[]', space=smem, size = 0x4, offset = 0x4, fixed_abs, tag = 'smem constant byte address 0x4 - core index']
  #allocation1 [shape = 'u32[144,128]{1,0:T(1,128)}', space=vmem, size = 0x12000, scoped, tag = 'internal scratch']
  %s0 = inlined_call_operand.hbm [shape: f32[8,128], index: 0, kind: input, shape index: {}]
  %s1 = inlined_call_operand.hbm [shape: f32[128,128], index: 1, kind: input, shape index: {}]
  %s2 = inlined_call_operand.vmem [shape: f32[1,128], index: 2, kind: input, shape index: {}]
  %s3 = inlined_call_operand.hbm [shape: f32[8,128], index: 3, kind: output, shape index: {}]
  %s4 = sld [smem:[#allocation0]]
  $region30: #{tpu_custom_call.1} parent=0
    _
  %s6 = ssub.s32 1, %s4
  %s7 = scalar_select 0, %s6, %s4
  $region1: #{tpu_custom_call.1} parent=0
    #allocation2 [shape = 'u8[4096]{0}', space=vmem, size = 0x1000, scoped, tag = 'input window, operand 0, single buffered']
    #allocation3 [shape = 's32[1]{0}', space=sflag, size = 0x4, scoped, tag = 'scoped memory for tpu_custom_call.1']
    #allocation4 [shape = 's32[1]{0}', space=sflag, size = 0x4, scoped, tag = 'scoped memory for tpu_custom_call.1']
    #allocation5 [shape = 'u8[65536]{0}', space=vmem, size = 0x10000, scoped, tag = 'input window, operand 1, single buffered']
    #allocation6 [shape = 's32[1]{0}', space=sflag, size = 0x4, scoped, tag = 'scoped memory for tpu_custom_call.1']
    #allocation7 [shape = 'u8[4096]{0}', space=vmem, size = 0x1000, scoped, tag = 'output window, operand 0, single buffered']
    %8 = vsyncpa [#allocation3], 0
    %9 = vsyncpa [#allocation6], 0
    %10 = vsyncpa [#allocation4], 0
    // Predicated region
    $region2: #{tpu_custom_call.1} parent=1 // pred_check
      _
    $region3: #{tpu_custom_call.1} parent=1 // pred_check_branch
      %12 = sbr.rel (0) target = $region5
    $region4: #{tpu_custom_call.1} parent=1 // pred_region
      %s14 = ssub.s32 128, 128
      %15 = vsyncadd [#allocation3], %s14
      %s17 = sshll.u32 [#allocation2], 4
      %s18 = int_to_ptr.vmem [resolvable:$true] %s17
      %20 = dma.hbm_to_vmem [thread:$0]  %s0, 128, %s18, [#allocation3]
    $region5: #{tpu_custom_call.1} parent=1 // pred_fallthru
      _
    // Predicated region
    $region6: #{tpu_custom_call.1} parent=1 // pred_check
      _
    $region7: #{tpu_custom_call.1} parent=1 // pred_check_branch
      %22 = sbr.rel (0) target = $region9
    $region8: #{tpu_custom_call.1} parent=1 // pred_region
      %s24 = ssub.s32 2048, 2048
      %25 = vsyncadd [#allocation6], %s24
      %s26 = sshll.u32 [#allocation5], 4
      %s27 = int_to_ptr.vmem [resolvable:$true] %s26
      %32 = dma.hbm_to_vmem [thread:$0]  %s1, 2048, %s27, [#allocation6], 128, 128, 8
    $region9: #{tpu_custom_call.1} parent=1 // pred_fallthru
      _
    // Predicated region
    $region10: #{tpu_custom_call.1} parent=1 // pred_check
      _
    $region11: #{tpu_custom_call.1} parent=1 // pred_check_branch
      %34 = sbr.rel (0) target = $region13
    $region12: #{tpu_custom_call.1} parent=1 // pred_region
      _
    $region13: #{tpu_custom_call.1} parent=1 // pred_fallthru
      _
    // Predicated region
    $region14: #{tpu_custom_call.1} parent=1 // pred_check
      _
    $region15: #{tpu_custom_call.1} parent=1 // pred_check_branch
      %36 = sbr.rel (0) target = $region17
    $region16: #{tpu_custom_call.1} parent=1 // pred_region
      %37 = dma.done [#allocation3], 128
    $region17: #{tpu_custom_call.1} parent=1 // pred_fallthru
      _
    // Predicated region
    $region18: #{tpu_custom_call.1} parent=1 // pred_check
      _
    $region19: #{tpu_custom_call.1} parent=1 // pred_check_branch
      %39 = sbr.rel (0) target = $region21
    $region20: #{tpu_custom_call.1} parent=1 // pred_region
      %40 = dma.done [#allocation6], 2048
    $region21: #{tpu_custom_call.1} parent=1 // pred_fallthru
      _
    %v41 = vld [vmem:[#allocation2] sm:$0xff]
    %v42 = vld [vmem:[#allocation5] sm:$0xff]
    %v43 = vld [vmem:[#allocation5 + $0x8] sm:$0xff]
    %v44 = vld [vmem:[#allocation5 + $0x10] sm:$0xff]
    %v45 = vld [vmem:[#allocation5 + $0x18] sm:$0xff]
    %v46 = vld [vmem:[#allocation5 + $0x20] sm:$0xff]
    %v47 = vld [vmem:[#allocation5 + $0x28] sm:$0xff]
    %v48 = vld [vmem:[#allocation5 + $0x30] sm:$0xff]
    %v49 = vld [vmem:[#allocation5 + $0x38] sm:$0xff]
    %v50 = vld [vmem:[#allocation5 + $0x40] sm:$0xff]
    %v51 = vld [vmem:[#allocation5 + $0x48] sm:$0xff]
    %v52 = vld [vmem:[#allocation5 + $0x50] sm:$0xff]
    %v53 = vld [vmem:[#allocation5 + $0x58] sm:$0xff]
    %v54 = vld [vmem:[#allocation5 + $0x60] sm:$0xff]
    %v55 = vld [vmem:[#allocation5 + $0x68] sm:$0xff]
    %v56 = vld [vmem:[#allocation5 + $0x70] sm:$0xff]
    %v57 = vld [vmem:[#allocation5 + $0x78] sm:$0xff]
    %v58 = vld [vmem:[%s2] sm:$0x1]
    %v60 = vlaneseq
    %v61 = vshrl.u32 %v60, 7
    %v62 = vsub.s32 0, %v61
    %v63 = vrot.slane %v58, %v62
    %65 = vmatprep.subr.mxu0 0.0
    %66 = vmatpush1.msra.mxu0 %v57
    %67 = vmatprep.subr.mxu0 0.0
    %68 = vmatpush1.msra.mxu0 %v56
    %69 = vmatprep.subr.mxu0 0.0
    %70 = vmatpush1.msra.mxu0 %v55
    %71 = vmatprep.subr.mxu0 0.0
    %72 = vmatpush1.msra.mxu0 %v54
    %73 = vmatprep.subr.mxu0 0.0
    %74 = vmatpush1.msra.mxu0 %v53
    %75 = vmatprep.subr.mxu0 0.0
    %76 = vmatpush1.msra.mxu0 %v52
    %77 = vmatprep.subr.mxu0 0.0
    %78 = vmatpush1.msra.mxu0 %v51
    %79 = vmatprep.subr.mxu0 0.0
    %80 = vmatpush1.msra.mxu0 %v50
    %81 = vmatprep.subr.mxu0 0.0
    %82 = vmatpush1.msra.mxu0 %v49
    %83 = vmatprep.subr.mxu0 0.0
    %84 = vmatpush1.msra.mxu0 %v48
    %85 = vmatprep.subr.mxu0 0.0
    %86 = vmatpush1.msra.mxu0 %v47
    %87 = vmatprep.subr.mxu0 0.0
    %88 = vmatpush1.msra.mxu0 %v46
    %89 = vmatprep.subr.mxu0 0.0
    %90 = vmatpush1.msra.mxu0 %v45
    %91 = vmatprep.subr.mxu0 0.0
    %92 = vmatpush1.msra.mxu0 %v44
    %93 = vmatprep.subr.mxu0 0.0
    %94 = vmatpush1.msra.mxu0 %v43
    %95 = vmatprep.subr.mxu0 0.0
    %96 = vmatpush1.msra.mxu0 %v42
    %97 = vmatprep.subr.mxu0 0.0
    %98 = vmatpush2.msra.mxu0 0.0
    %99 = vmatprep.subr.mxu0 0.0
    %100 = vmatpush2.msra.mxu0 0.0
    %101 = vmatprep.subr.mxu0 0.0
    %102 = vmatpush2.msra.mxu0 0.0
    %103 = vmatprep.subr.mxu0 0.0
    %104 = vmatpush2.msra.mxu0 0.0
    %105 = vmatprep.subr.mxu0 0.0
    %106 = vmatpush2.msra.mxu0 0.0
    %107 = vmatprep.subr.mxu0 0.0
    %108 = vmatpush2.msra.mxu0 0.0
    %109 = vmatprep.subr.mxu0 0.0
    %110 = vmatpush2.msra.mxu0 0.0
    %111 = vmatprep.subr.mxu0 0.0
    %112 = vmatpush2.msra.mxu0 0.0
    %113 = vmatprep.subr.mxu0 0.0
    %114 = vmatpush2.msra.mxu0 0.0
    %115 = vmatprep.subr.mxu0 0.0
    %116 = vmatpush2.msra.mxu0 0.0
    %117 = vmatprep.subr.mxu0 0.0
    %118 = vmatpush2.msra.mxu0 0.0
    %119 = vmatprep.subr.mxu0 0.0
    %120 = vmatpush2.msra.mxu0 0.0
    %121 = vmatprep.subr.mxu0 0.0
    %122 = vmatpush2.msra.mxu0 0.0
    %123 = vmatprep.subr.mxu0 0.0
    %124 = vmatpush2.msra.mxu0 0.0
    %125 = vmatprep.subr.mxu0 0.0
    %126 = vmatpush2.msra.mxu0 0.0
    %127 = vmatprep.subr.mxu0 0.0
    %128 = vmatpush2.msra.mxu0 0.0
    %129 = vmatprep.mubr.f32.mxu0 0.0
    %130 = vmatmul.mubr.f32.gmra.mxu0 %v41
    %v131 = vpop.f32.mrf.mxu0
    %v132 = vadd.f32 %v63, %v131
    %v133 = vpop.f32.mrf.mxu0
    %134 = vdwg.mxu0
    %v135 = vtanh.pop %v132
    %136 = vst [vmem:[#allocation7] sm:$0xff] %v135
    // Predicated region
    $region22: #{tpu_custom_call.1} parent=1 // pred_check
      _
    $region23: #{tpu_custom_call.1} parent=1 // pred_check_branch
      %138 = sbr.rel (0) target = $region25
    $region24: #{tpu_custom_call.1} parent=1 // pred_region
      %s140 = ssub.s32 128, 128
      %141 = vsyncadd [#allocation4], %s140
      %s143 = sshll.u32 [#allocation7], 4
      %s144 = int_to_ptr.vmem [resolvable:$true] %s143
      %146 = dma.vmem_to_hbm [thread:$0]  %s144, 128, %s3, [#allocation4]
    $region25: #{tpu_custom_call.1} parent=1 // pred_fallthru
      _
    // Predicated region
    $region26: #{tpu_custom_call.1} parent=1 // pred_check
      _
    $region27: #{tpu_custom_call.1} parent=1 // pred_check_branch
      %148 = sbr.rel (0) target = $region29
    $region28: #{tpu_custom_call.1} parent=1 // pred_region
      %149 = dma.done [#allocation4], 128
    $region29: #{tpu_custom_call.1} parent=1 // pred_fallthru
      _
    %150 = vsyncpa [#allocation3], 1
    %151 = vsyncpa [#allocation6], 1
    %152 = vsyncpa [#allocation4], 1

</llo_original>
